<compile_context>
chip_gen: v5e
topology: v5e:2x2
jax: 0.10.0
libtpu: 0.0.40
codegen_flags: <defaults>
</compile_context>

<pallas_src>
import functools
import math

import numpy as np

import jax
import jax.numpy as jnp
from jax.experimental import pallas as pl
from jax.experimental.pallas import tpu as pltpu


def _dau_unif_kernel(
    # scalar-prefetch refs (SMEM), shape (num_splits, steps) int32
    i_ids_ref, j_ids_ref, w_ref,
    # inputs: (tile, D) row slabs of 2*normalize(u) and 2*normalize(p)
    u_i_ref, u_j_ref, p_i_ref, p_j_ref,
    # outputs: per-core partial-sum accumulators, (1, 8, tile) f32 blocks
    out_u_ref, out_p_ref):
    c = pl.program_id(0)          # core / split index   ("parallel")
    t = pl.program_id(1)          # schedule step        ("arbitrary")

    @pl.when(t == 0)
    def _init():
        out_u_ref[...] = jnp.zeros_like(out_u_ref)
        out_p_ref[...] = jnp.zeros_like(out_p_ref)

    # weight: 1 = diagonal tile, 2 = off-diagonal (symmetry), 0 = padding step
    w = w_ref[c, t].astype(jnp.float32)

    # Contract the last axis of both operands (trans_b form) -> Gram on the MXU.
    dn = (((1,), (1,)), ((), ()))

    def exp_sublane_sums(xi, xj):
        # operands are 2*normalize(x) => g = 4 * <xn_i, xn_j>
        g = jax.lax.dot_general(xi, xj, dimension_numbers=dn,
                                preferred_element_type=jnp.float32)
        e = jnp.exp(g)            # e^-4 factor + diagonal handled in wrapper
        tile_rows, tile_cols = e.shape
        # Fold the (tile, tile) matrix into an (8, tile) partial sum with pure
        # vreg adds (sublane-aligned reshape, no cross-lane XLU reduction).
        e = e.reshape(tile_rows // 8, 8, tile_cols)
        return jnp.sum(e, axis=0)

    out_u_ref[...] = out_u_ref[...] + (
        w * exp_sublane_sums(u_i_ref[...], u_j_ref[...]))[None]
    out_p_ref[...] = out_p_ref[...] + (
        w * exp_sublane_sums(p_i_ref[...], p_j_ref[...]))[None]


def _round_up(x: int, m: int) -> int:
    return ((x + m - 1) // m) * m


def _default_tile(B: int, D: int) -> int:
    """Largest MXU/lane-friendly row block whose pipelined working set fits
    comfortably in scoped VMEM (review: tile multiple of 128, cap for large D)."""
    tile = 128
    for cand in (512, 256, 128):
        est = 4 * 2 * cand * D * 4 + 6 * cand * cand * 4
        if est <= 24 * (1 << 20):
            tile = cand
            break
    # Don't pad a tiny batch past a single 128-row tile.
    return min(tile, _round_up(max(B, 1), 128))


@functools.lru_cache(maxsize=None)
def _triangular_schedule(T: int, num_splits: int):
    """Flattened i<=j block-pair schedule, split into num_splits equal rows.

    Returns int32 numpy arrays (num_splits, steps): block-row ids, block-col
    ids, and weights (1 diag, 2 off-diag, 0 padding)."""
    pairs = [(i, j) for i in range(T) for j in range(i, T)]
    n = len(pairs)
    steps = max(1, -(-n // num_splits))
    i_ids = np.zeros((num_splits, steps), np.int32)
    j_ids = np.zeros((num_splits, steps), np.int32)
    w = np.zeros((num_splits, steps), np.int32)
    for k, (i, j) in enumerate(pairs):
        c, t = divmod(k, steps)
        i_ids[c, t] = i
        j_ids[c, t] = j
        w[c, t] = 1 if i == j else 2
    return i_ids, j_ids, w


def dau_loss(user_embedding: jax.Array,
             positive_item_embedding: jax.Array,
             gamma: float = 1.0,
             *,
             tile: int | None = None,
             use_bf16: bool = False,
             num_splits: int = 2) -> jax.Array:
    """DirectAU loss. Inputs: (batch, dim) embedding matrices."""
    B, D = user_embedding.shape
    assert positive_item_embedding.shape == (B, D)

    u = user_embedding.astype(jnp.float32)
    p = positive_item_embedding.astype(jnp.float32)

    # --- pre-normalize ONCE (rsqrt, x2 scale so the Gram tile is 4*cos) ------
    eps = jnp.float32(1e-12)  # matches torch.nn.functional.normalize

    def normalize2(x):
        ssq = jnp.sum(x * x, axis=-1, keepdims=True)
        return (2.0 * x) * jax.lax.rsqrt(jnp.maximum(ssq, eps * eps))

    u2 = normalize2(u)   # == 2 * normalize(u)
    p2 = normalize2(p)

    # alignment: ||un - pn||^2 = 2 - 2<un,pn> = 2 - 0.5<u2,p2>  (wrapper-side)
    align = 2.0 - 0.5 * jnp.mean(jnp.sum(u2 * p2, axis=-1))

    # --- tiling / batch padding ----------------------------------------------
    if tile is None:
        tile = _default_tile(B, D)
    assert tile % 8 == 0, "tile must be a multiple of 8"
    Bp = _round_up(B, tile)
    if Bp != B:
        pad_rows = ((0, Bp - B), (0, 0))
        u2 = jnp.pad(u2, pad_rows)   # padded rows are exactly zero
        p2 = jnp.pad(p2, pad_rows)

    u2k = u2.astype(jnp.bfloat16) if use_bf16 else u2
    p2k = p2.astype(jnp.bfloat16) if use_bf16 else p2

    T = Bp // tile
    i_np, j_np, w_np = _triangular_schedule(T, num_splits)
    steps = i_np.shape[1]
    i_ids = jnp.asarray(i_np)
    j_ids = jnp.asarray(j_np)
    w_arr = jnp.asarray(w_np)

    row_spec_i = pl.BlockSpec((tile, D), lambda c, t, i_ids, j_ids, w: (i_ids[c, t], 0))
    row_spec_j = pl.BlockSpec((tile, D), lambda c, t, i_ids, j_ids, w: (j_ids[c, t], 0))
    out_spec = pl.BlockSpec((1, 8, tile), lambda c, t, i_ids, j_ids, w: (c, 0, 0))

    # explicit scoped-VMEM budget (v5e default is only 16 MiB)
    bpe = 2 if use_bf16 else 4
    est_vmem = (4 * 2 * tile * D * bpe       # 4 slabs, double buffered
                + 2 * 8 * tile * 4           # resident output accumulators
                + 6 * tile * tile * 4        # Gram / exp temporaries
                + (2 << 20))
    vmem_limit = int(min(56 * (1 << 20), max(32 * (1 << 20), 2 * est_vmem)))

    out_u, out_p = pl.pallas_call(
        _dau_unif_kernel,
        out_shape=(jax.ShapeDtypeStruct((num_splits, 8, tile), jnp.float32),
                   jax.ShapeDtypeStruct((num_splits, 8, tile), jnp.float32)),
        grid_spec=pltpu.PrefetchScalarGridSpec(
            num_scalar_prefetch=3,
            grid=(num_splits, steps),
            in_specs=[row_spec_i, row_spec_j, row_spec_i, row_spec_j],
            out_specs=[out_spec, out_spec],
        ),
        compiler_params=pltpu.CompilerParams(
            dimension_semantics=("parallel", "arbitrary"),
            vmem_limit_bytes=vmem_limit),
    )(i_ids, j_ids, w_arr, u2k, u2k, p2k, p2k)

    # --- wrapper-side finalize -------------------------------------------------
    # out_* hold per-core partial sums of exp(4*cos) over the full symmetric
    # (Bp x Bp) matrix (padded rows included).
    S_u = jnp.sum(out_u)
    S_p = jnp.sum(out_p)

    Bf = jnp.float32(B)
    pad_corr = jnp.float32(Bp * Bp - B * B)   # padded zero rows: exp(0)=1 each
    denom = Bf * (Bf - 1.0)                   # ordered off-diag pair count
    e_m4 = jnp.float32(math.exp(-4.0))

    def uniformity(S):
        s_rr = S - pad_corr                   # real x real contribution
        # e^-4 * s_rr = sum exp(-2*d2) over the full B x B matrix; subtract the
        # B analytic diagonal ones; divide by B(B-1) == mean over i<j pairs.
        return jnp.log((e_m4 * s_rr - Bf) / denom)

    return align + jnp.float32(gamma) * 0.5 * (uniformity(S_u) + uniformity(S_p))


def _dau_loss_ref(u, p, gamma=1.0):
    """Pure-JAX reference mirroring the PyTorch module."""
    def normalize(x):
        n = jnp.linalg.norm(x, axis=-1, keepdims=True)
        return x / jnp.maximum(n, 1e-12)

    un, pn = normalize(u), normalize(p)
    align = jnp.mean(jnp.sum((un - pn) ** 2, axis=-1))

    def uniformity(xn):
        d2 = jnp.sum((xn[:, None, :] - xn[None, :, :]) ** 2, axis=-1)
        B = xn.shape[0]
        iu = jnp.triu_indices(B, k=1)
        return jnp.log(jnp.mean(jnp.exp(-2.0 * d2[iu])))

    unif = (uniformity(un) + uniformity(pn)) / 2.0
    return align + gamma * unif


if __name__ == "__main__":
    key = jax.random.PRNGKey(0)
    k1, k2, k3, k4, k5, k6 = jax.random.split(key, 6)

    # --- Test 1: single tile; the 2-way split leaves one padding step. ---
    B, D = 8, 32
    u1 = jax.random.normal(k1, (B, D), dtype=jnp.float32)
    p1 = jax.random.normal(k2, (B, D), dtype=jnp.float32)
    got1 = jax.block_until_ready(dau_loss(u1, p1, gamma=1.0, tile=8))
    ref1 = _dau_loss_ref(u1, p1, gamma=1.0)
    assert jnp.allclose(got1, ref1, rtol=3e-5, atol=3e-5), (got1, ref1)

    # --- Test 2: triangular multi-tile path, symmetry weight, padded rows. ---
    B2, D2 = 40, 64
    u2 = jax.random.normal(k3, (B2, D2), dtype=jnp.float32)
    p2 = jax.random.normal(k4, (B2, D2), dtype=jnp.float32)
    got2 = jax.block_until_ready(dau_loss(u2, p2, gamma=0.5, tile=16))
    ref2 = _dau_loss_ref(u2, p2, gamma=0.5)
    assert jnp.allclose(got2, ref2, rtol=3e-5, atol=3e-5), (got2, ref2)

    # --- Test 3: default lane-dense tile (multiple of 128) + batch padding. ---
    B3, D3 = 192, 64
    u3 = jax.random.normal(k5, (B3, D3), dtype=jnp.float32)
    p3 = jax.random.normal(k6, (B3, D3), dtype=jnp.float32)
    got3 = jax.block_until_ready(dau_loss(u3, p3, gamma=1.0))
    ref3 = _dau_loss_ref(u3, p3, gamma=1.0)
    assert jnp.allclose(got3, ref3, rtol=1e-4, atol=1e-4), (got3, ref3)

    print("KERNEL_OK")
</pallas_src>

<mosaic_0001>
module attributes {stable_mosaic.version = 11 : i64} {
  func.func @_dau_unif_kernel(%arg0: i32, %arg1: i32, %arg2: memref<2x1xi32, #tpu.memory_space<smem>>, %arg3: memref<2x1xi32, #tpu.memory_space<smem>>, %arg4: memref<2x1xi32, #tpu.memory_space<smem>>, %arg5: memref<8x32xf32, #tpu.memory_space<vmem>>, %arg6: memref<8x32xf32, #tpu.memory_space<vmem>>, %arg7: memref<8x32xf32, #tpu.memory_space<vmem>>, %arg8: memref<8x32xf32, #tpu.memory_space<vmem>>, %arg9: memref<1x8x8xf32, #tpu.memory_space<vmem>>, %arg10: memref<1x8x8xf32, #tpu.memory_space<vmem>>) attributes {dimension_semantics = [#tpu.dimension_semantics<parallel>, #tpu.dimension_semantics<arbitrary>], iteration_bounds = array<i64: 2, 1>, scalar_prefetch = 3 : i64, scratch_operands = 0 : i64, tpu.core_type = #tpu.core_type<tc>, window_params = [{transform_indices = @transform_0, window_bounds = array<i64: 8, 32>}, {transform_indices = @transform_1, window_bounds = array<i64: 8, 32>}, {transform_indices = @transform_2, window_bounds = array<i64: 8, 32>}, {transform_indices = @transform_3, window_bounds = array<i64: 8, 32>}, {transform_indices = @transform_4, window_bounds = array<i64: 1, 8, 8>}, {transform_indices = @transform_5, window_bounds = array<i64: 1, 8, 8>}]} {
    %c0_i32 = arith.constant 0 : i32
    %0 = arith.cmpi eq, %arg1, %c0_i32 : i32
    %1 = arith.extui %0 : i1 to i32
    %c0_i32_0 = arith.constant 0 : i32
    %2 = arith.cmpi ne, %1, %c0_i32_0 : i32
    scf.if %2 {
      %cst_23 = arith.constant 0.000000e+00 : f32
      %31 = vector.broadcast %cst_23 : f32 to vector<1x8x8xf32>
      %c0_24 = arith.constant 0 : index
      %c0_25 = arith.constant 0 : index
      %c0_26 = arith.constant 0 : index
      %32 = vector.load %arg9[%c0_24, %c0_25, %c0_26] : memref<1x8x8xf32, #tpu.memory_space<vmem>>, vector<1x8x8xf32>
      tpu.vector_store %arg9[%c0_24, %c0_25, %c0_26], %31 {strides = array<i32>} : memref<1x8x8xf32, #tpu.memory_space<vmem>>, vector<1x8x8xf32>,
      %cst_27 = arith.constant 0.000000e+00 : f32
      %33 = vector.broadcast %cst_27 : f32 to vector<1x8x8xf32>
      %c0_28 = arith.constant 0 : index
      %c0_29 = arith.constant 0 : index
      %c0_30 = arith.constant 0 : index
      %34 = vector.load %arg10[%c0_28, %c0_29, %c0_30] : memref<1x8x8xf32, #tpu.memory_space<vmem>>, vector<1x8x8xf32>
      tpu.vector_store %arg10[%c0_28, %c0_29, %c0_30], %33 {strides = array<i32>} : memref<1x8x8xf32, #tpu.memory_space<vmem>>, vector<1x8x8xf32>,
    } else {
    }
    %3 = arith.index_cast %arg0 : i32 to index
    %4 = arith.index_cast %arg1 : i32 to index
    %5 = memref.load %arg4[%3, %4] : memref<2x1xi32, #tpu.memory_space<smem>>
    %6 = arith.sitofp %5 : i32 to f32
    %c0 = arith.constant 0 : index
    %c0_1 = arith.constant 0 : index
    %c0_2 = arith.constant 0 : index
    %7 = vector.load %arg9[%c0, %c0_1, %c0_2] : memref<1x8x8xf32, #tpu.memory_space<vmem>>, vector<1x8x8xf32>
    %c0_3 = arith.constant 0 : index
    %c0_4 = arith.constant 0 : index
    %8 = vector.load %arg5[%c0_3, %c0_4] : memref<8x32xf32, #tpu.memory_space<vmem>>, vector<8x32xf32>
    %c0_5 = arith.constant 0 : index
    %c0_6 = arith.constant 0 : index
    %9 = vector.load %arg6[%c0_5, %c0_6] : memref<8x32xf32, #tpu.memory_space<vmem>>, vector<8x32xf32>
    %cst = arith.constant dense<0.000000e+00> : vector<8x8xf32>
    %10 = tpu.matmul %8, %9, %cst {dimension_numbers = #tpu.dot_dimension_numbers<[1], [1], [0], [0], [0, 0, 1, 0], [], []>} : vector<8x32xf32>, vector<8x32xf32>, vector<8x8xf32> -> vector<8x8xf32>
    %11 = math.exp %10 : vector<8x8xf32>
    %12 = vector.shape_cast %11 : vector<8x8xf32> to vector<1x8x8xf32>
    %cst_7 = arith.constant dense<0.000000e+00> : vector<8x8xf32>
    %13 = vector.multi_reduction <add>, %12, %cst_7 [0] : vector<1x8x8xf32> to vector<8x8xf32>
    %14 = vector.broadcast %6 : f32 to vector<8x8xf32>
    %15 = arith.mulf %14, %13 : vector<8x8xf32>
    %16 = vector.shape_cast %15 : vector<8x8xf32> to vector<1x8x8xf32>
    %17 = arith.addf %7, %16 : vector<1x8x8xf32>
    %c0_8 = arith.constant 0 : index
    %c0_9 = arith.constant 0 : index
    %c0_10 = arith.constant 0 : index
    %18 = vector.load %arg9[%c0_8, %c0_9, %c0_10] : memref<1x8x8xf32, #tpu.memory_space<vmem>>, vector<1x8x8xf32>
    tpu.vector_store %arg9[%c0_8, %c0_9, %c0_10], %17 {strides = array<i32>} : memref<1x8x8xf32, #tpu.memory_space<vmem>>, vector<1x8x8xf32>,
    %c0_11 = arith.constant 0 : index
    %c0_12 = arith.constant 0 : index
    %c0_13 = arith.constant 0 : index
    %19 = vector.load %arg10[%c0_11, %c0_12, %c0_13] : memref<1x8x8xf32, #tpu.memory_space<vmem>>, vector<1x8x8xf32>
    %c0_14 = arith.constant 0 : index
    %c0_15 = arith.constant 0 : index
    %20 = vector.load %arg7[%c0_14, %c0_15] : memref<8x32xf32, #tpu.memory_space<vmem>>, vector<8x32xf32>
    %c0_16 = arith.constant 0 : index
    %c0_17 = arith.constant 0 : index
    %21 = vector.load %arg8[%c0_16, %c0_17] : memref<8x32xf32, #tpu.memory_space<vmem>>, vector<8x32xf32>
    %cst_18 = arith.constant dense<0.000000e+00> : vector<8x8xf32>
    %22 = tpu.matmul %20, %21, %cst_18 {dimension_numbers = #tpu.dot_dimension_numbers<[1], [1], [0], [0], [0, 0, 1, 0], [], []>} : vector<8x32xf32>, vector<8x32xf32>, vector<8x8xf32> -> vector<8x8xf32>
    %23 = math.exp %22 : vector<8x8xf32>
    %24 = vector.shape_cast %23 : vector<8x8xf32> to vector<1x8x8xf32>
    %cst_19 = arith.constant dense<0.000000e+00> : vector<8x8xf32>
    %25 = vector.multi_reduction <add>, %24, %cst_19 [0] : vector<1x8x8xf32> to vector<8x8xf32>
    %26 = vector.broadcast %6 : f32 to vector<8x8xf32>
    %27 = arith.mulf %26, %25 : vector<8x8xf32>
    %28 = vector.shape_cast %27 : vector<8x8xf32> to vector<1x8x8xf32>
    %29 = arith.addf %19, %28 : vector<1x8x8xf32>
    %c0_20 = arith.constant 0 : index
    %c0_21 = arith.constant 0 : index
    %c0_22 = arith.constant 0 : index
    %30 = vector.load %arg10[%c0_20, %c0_21, %c0_22] : memref<1x8x8xf32, #tpu.memory_space<vmem>>, vector<1x8x8xf32>
    tpu.vector_store %arg10[%c0_20, %c0_21, %c0_22], %29 {strides = array<i32>} : memref<1x8x8xf32, #tpu.memory_space<vmem>>, vector<1x8x8xf32>,
    return
  }
  func.func @transform_0(%arg0: i32, %arg1: i32, %arg2: memref<2x1xi32, #tpu.memory_space<smem>>, %arg3: memref<2x1xi32, #tpu.memory_space<smem>>, %arg4: memref<2x1xi32, #tpu.memory_space<smem>>) -> (i32, i32) {
    %0 = arith.index_cast %arg0 : i32 to index
    %1 = arith.index_cast %arg1 : i32 to index
    %2 = memref.load %arg2[%0, %1] : memref<2x1xi32, #tpu.memory_space<smem>>
    %c0_i32 = arith.constant 0 : i32
    %c0_i32_0 = arith.constant 0 : i32
    return %2, %c0_i32 : i32, i32
  }
  func.func @transform_1(%arg0: i32, %arg1: i32, %arg2: memref<2x1xi32, #tpu.memory_space<smem>>, %arg3: memref<2x1xi32, #tpu.memory_space<smem>>, %arg4: memref<2x1xi32, #tpu.memory_space<smem>>) -> (i32, i32) {
    %0 = arith.index_cast %arg0 : i32 to index
    %1 = arith.index_cast %arg1 : i32 to index
    %2 = memref.load %arg3[%0, %1] : memref<2x1xi32, #tpu.memory_space<smem>>
    %c0_i32 = arith.constant 0 : i32
    %c0_i32_0 = arith.constant 0 : i32
    return %2, %c0_i32 : i32, i32
  }
  func.func @transform_2(%arg0: i32, %arg1: i32, %arg2: memref<2x1xi32, #tpu.memory_space<smem>>, %arg3: memref<2x1xi32, #tpu.memory_space<smem>>, %arg4: memref<2x1xi32, #tpu.memory_space<smem>>) -> (i32, i32) {
    %0 = arith.index_cast %arg0 : i32 to index
    %1 = arith.index_cast %arg1 : i32 to index
    %2 = memref.load %arg2[%0, %1] : memref<2x1xi32, #tpu.memory_space<smem>>
    %c0_i32 = arith.constant 0 : i32
    %c0_i32_0 = arith.constant 0 : i32
    return %2, %c0_i32 : i32, i32
  }
  func.func @transform_3(%arg0: i32, %arg1: i32, %arg2: memref<2x1xi32, #tpu.memory_space<smem>>, %arg3: memref<2x1xi32, #tpu.memory_space<smem>>, %arg4: memref<2x1xi32, #tpu.memory_space<smem>>) -> (i32, i32) {
    %0 = arith.index_cast %arg0 : i32 to index
    %1 = arith.index_cast %arg1 : i32 to index
    %2 = memref.load %arg3[%0, %1] : memref<2x1xi32, #tpu.memory_space<smem>>
    %c0_i32 = arith.constant 0 : i32
    %c0_i32_0 = arith.constant 0 : i32
    return %2, %c0_i32 : i32, i32
  }
  func.func @transform_4(%arg0: i32, %arg1: i32, %arg2: memref<2x1xi32, #tpu.memory_space<smem>>, %arg3: memref<2x1xi32, #tpu.memory_space<smem>>, %arg4: memref<2x1xi32, #tpu.memory_space<smem>>) -> (i32, i32, i32) {
    %c0_i32 = arith.constant 0 : i32
    %c0_i32_0 = arith.constant 0 : i32
    %c0_i32_1 = arith.constant 0 : i32
    return %arg0, %c0_i32, %c0_i32_0 : i32, i32, i32
  }
  func.func @transform_5(%arg0: i32, %arg1: i32, %arg2: memref<2x1xi32, #tpu.memory_space<smem>>, %arg3: memref<2x1xi32, #tpu.memory_space<smem>>, %arg4: memref<2x1xi32, #tpu.memory_space<smem>>) -> (i32, i32, i32) {
    %c0_i32 = arith.constant 0 : i32
    %c0_i32_0 = arith.constant 0 : i32
    %c0_i32_1 = arith.constant 0 : i32
    return %arg0, %c0_i32, %c0_i32_0 : i32, i32, i32
  }
}

</mosaic_0001>

<llo_original>
// kernel: tpu_custom_call.1
$region0: #{tpu_custom_call.1}
  #allocation0 [shape = 'u32[]', space=smem, size = 0x4, offset = 0x4, fixed_abs, tag = 'smem constant byte address 0x4 - core index']
  #allocation1 [shape = 'u32[72,128]{1,0:T(1,128)}', space=vmem, size = 0x9000, scoped, tag = 'internal scratch']
  #allocation2 [shape = 's32[1]{0}', space=sflag, size = 0x4, scoped, tag = 'scoped memory for tpu_custom_call.1']
  #allocation3 [shape = 'u8[1024]{0}', space=smem, size = 0x400, scoped, tag = 'prefetched SMEM operand 0']
  #allocation4 [shape = 'u8[1024]{0}', space=smem, size = 0x400, scoped, tag = 'prefetched SMEM operand 1']
  #allocation5 [shape = 'u8[1024]{0}', space=smem, size = 0x400, scoped, tag = 'prefetched SMEM operand 2']
  %s0 = inlined_call_operand.vmem [shape: s32[2,1], index: 0, kind: input, shape index: {}]
  %s1 = inlined_call_operand.vmem [shape: s32[2,1], index: 1, kind: input, shape index: {}]
  %s2 = inlined_call_operand.vmem [shape: s32[2,1], index: 2, kind: input, shape index: {}]
  %s3 = inlined_call_operand.hbm [shape: f32[8,32], index: 3, kind: input, shape index: {}]
  %s4 = inlined_call_operand.hbm [shape: f32[8,32], index: 4, kind: input, shape index: {}]
  %s5 = inlined_call_operand.hbm [shape: f32[8,32], index: 5, kind: input, shape index: {}]
  %s6 = inlined_call_operand.hbm [shape: f32[8,32], index: 6, kind: input, shape index: {}]
  %s7 = inlined_call_operand.hbm [shape: f32[2,8,8], index: 7, kind: output, shape index: {0}]
  %s8 = inlined_call_operand.hbm [shape: f32[2,8,8], index: 8, kind: output, shape index: {1}]
  %9 = xla_tuple %s7, %s8
  %s10 = sld [smem:[#allocation0]]
  $region77: #{tpu_custom_call.1} parent=0
    _
  %s12 = ssub.s32 1, %s10
  %s13 = scalar_select 0, %s12, %s10
  %s15 = sshll.u32 %s0, 4
  %s16 = int_to_ptr.vmem [resolvable:$true] %s15
  %18 = dma.vmem_to_smem %s16, 32, [#allocation3], [#allocation2]
  %s20 = sshll.u32 %s1, 4
  %s21 = int_to_ptr.vmem [resolvable:$true] %s20
  %23 = dma.vmem_to_smem %s21, 32, [#allocation4], [#allocation2]
  %s25 = sshll.u32 %s2, 4
  %s26 = int_to_ptr.vmem [resolvable:$true] %s25
  %28 = dma.vmem_to_smem %s26, 32, [#allocation5], [#allocation2]
  %30 = dma.done [#allocation2], 96
  %31 = sfence
  $region1: #{tpu_custom_call.1} parent=0
    #allocation6 [shape = 'u8[8192]{0}', space=vmem, size = 0x2000, scoped, tag = 'input window, operand 3']
    #allocation7 [shape = 's32[2]{0}', space=sflag, size = 0x8, scoped, tag = 'scoped memory for tpu_custom_call.1']
    #allocation8 [shape = 's32[2]{0}', space=sflag, size = 0x8, scoped, tag = 'scoped memory for tpu_custom_call.1']
    #allocation9 [shape = 'u8[8192]{0}', space=vmem, size = 0x2000, scoped, tag = 'input window, operand 4']
    #allocation10 [shape = 's32[2]{0}', space=sflag, size = 0x8, scoped, tag = 'scoped memory for tpu_custom_call.1']
    #allocation11 [shape = 'u8[8192]{0}', space=vmem, size = 0x2000, scoped, tag = 'input window, operand 5']
    #allocation12 [shape = 'u8[8192]{0}', space=vmem, size = 0x2000, scoped, tag = 'input window, operand 6']
    #allocation13 [shape = 's32[2]{0}', space=sflag, size = 0x8, scoped, tag = 'scoped memory for tpu_custom_call.1']
    #allocation14 [shape = 'u8[8192]{0}', space=vmem, size = 0x2000, scoped, tag = 'output window, operand 0']
    #allocation15 [shape = 'u8[8192]{0}', space=vmem, size = 0x2000, scoped, tag = 'output window, operand 1']
    #allocation16 [shape = 's32[2]{0}', space=sflag, size = 0x8, scoped, tag = 'scoped memory for tpu_custom_call.1']
    %32 = vsyncpa [#allocation7], 0
    %s33 = scalar_lea.sflag [#allocation7], 1
    %34 = vsyncpa %s33, 0
    %35 = vsyncpa [#allocation10], 0
    %s36 = scalar_lea.sflag [#allocation10], 1
    %37 = vsyncpa %s36, 0
    %38 = vsyncpa [#allocation13], 0
    %s39 = scalar_lea.sflag [#allocation13], 1
    %40 = vsyncpa %s39, 0
    %41 = vsyncpa [#allocation8], 0
    %s42 = scalar_lea.sflag [#allocation8], 1
    %43 = vsyncpa %s42, 0
    %44 = vsyncpa [#allocation16], 0
    %s45 = scalar_lea.sflag [#allocation16], 1
    %46 = vsyncpa %s45, 0
    loop: start=0, step=1, limit=4
    $region2: #{tpu_custom_call.1} parent=1 // loop_pre_header
      _
    $region3: #{tpu_custom_call.1} parent=1 // loop_header
      %s48 = sphi 0, %s52
      %p49 = scmp.ge.s32.totalorder %s48, 4
      %s55 = sphi 0, %s67
      %s56 = sphi 0, %s63
      %s57 = sphi 0, %s55
      %s58 = sphi 0, %s56
      %s59 = sphi 0, %s57
      %s60 = sphi 0, %s58
      %s86 = sphi 0, %s88
      %s89 = sphi 0, %s86
      %s90 = sphi 0, %s89
      %s106 = sphi 0, %s90
      %s128 = sphi 0, %s130
      %s131 = sphi 0, %s128
      %s132 = sphi 0, %s131
      %s148 = sphi 0, %s132
      %s170 = sphi 0, %s172
      %s173 = sphi 0, %s170
      %s174 = sphi 0, %s173
      %s190 = sphi 0, %s174
      %s212 = sphi 0, %s214
      %s215 = sphi 0, %s212
      %s216 = sphi 0, %s215
      %s232 = sphi 0, %s216
      %s238 = sphi 0, %s240
      %s241 = sphi 0, %s238
      %s242 = sphi 0, %s241
      %s258 = sphi 0, %s242
      %s264 = sphi 0, %s266
      %s267 = sphi 0, %s264
      %s268 = sphi 0, %s267
      %s284 = sphi 0, %s268
    $region4: #{tpu_custom_call.1} parent=1 // loop_header_branch
      %51 = sbr.rel (%p49) target = $region8
    $region5: #{tpu_custom_call.1} parent=1 // loop_body
      %s53 = ssub.s32 %s48, 1
      %s54 = ssub.s32 %s48, 2
      %s61 = sadd.s32 1, %s56
      %p62 = scmp.ge.s32.totalorder %s61, 1
      %s63 = scalar_select %p62, 0, %s61
      %s64 = sadd.s32 1, %s55
      %s65 = scalar_select %p62, %s64, %s55
      %p66 = scmp.ge.s32.totalorder %s65, 2
      %s67 = scalar_select %p66, 0, %s65
      %s68 = sshra.s32 %s56, 7
      %s69 = sand.u32 %s56, 127
      %s70 = sadd.s32 %s68, %s55
      %s71 = smul.u32 %s70, 128
      %s72 = sshra.s32 %s56, 7
      %s73 = sand.u32 %s56, 127
      %s74 = sadd.s32 %s71, %s73
      %s75 = sld [smem:[#allocation3 + %s74]]
      %s76 = sshra.s32 %s63, 7
      %s77 = sand.u32 %s63, 127
      %s78 = sadd.s32 %s76, %s67
      %s79 = smul.u32 %s78, 128
      %s80 = sshra.s32 %s63, 7
      %s81 = sand.u32 %s63, 127
      %s82 = sadd.s32 %s79, %s81
      %s83 = sld [smem:[#allocation3 + %s82]]
      %s84 = ssub.s32 %s75, %s83
      %p85 = scmp.eq.s32.totalorder %s84, 0
      %s87 = sadd.s32 %s86, 1
      %s88 = scalar_select %p85, %s86, %s87
      %p91 = pneg %p85
      %p92 = scmp.eq.s32.totalorder %s48, 1
      %p93 = por %p91, %p92
      %p94 = scmp.ne.s32.totalorder %s86, %s89
      %p95 = scmp.eq.s32.totalorder %s48, 0
      %p96 = por %p94, %p95
      %p97 = scmp.ne.s32.totalorder %s86, %s89
      %p98 = scmp.eq.s32.totalorder %s53, 1
      %p99 = por %p97, %p98
      %p100 = scmp.ne.s32.totalorder %s89, %s90
      %p101 = scmp.eq.s32.totalorder %s53, 0
      %p102 = por %p100, %p101
      %p103 = scmp.ne.s32.totalorder %s89, %s90
      %p104 = scmp.eq.s32.totalorder %s54, 1
      %p105 = por %p103, %p104
      %p107 = scmp.ne.s32.totalorder %s90, %s106
      %p108 = scmp.eq.s32.totalorder %s54, 0
      %p109 = por %p107, %p108
      %s110 = sshra.s32 %s56, 7
      %s111 = sand.u32 %s56, 127
      %s112 = sadd.s32 %s110, %s55
      %s113 = smul.u32 %s112, 128
      %s114 = sshra.s32 %s56, 7
      %s115 = sand.u32 %s56, 127
      %s116 = sadd.s32 %s113, %s115
      %s117 = sld [smem:[#allocation4 + %s116]]
      %s118 = sshra.s32 %s63, 7
      %s119 = sand.u32 %s63, 127
      %s120 = sadd.s32 %s118, %s67
      %s121 = smul.u32 %s120, 128
      %s122 = sshra.s32 %s63, 7
      %s123 = sand.u32 %s63, 127
      %s124 = sadd.s32 %s121, %s123
      %s125 = sld [smem:[#allocation4 + %s124]]
      %s126 = ssub.s32 %s117, %s125
      %p127 = scmp.eq.s32.totalorder %s126, 0
      %s129 = sadd.s32 %s128, 1
      %s130 = scalar_select %p127, %s128, %s129
      %p133 = pneg %p127
      %p134 = scmp.eq.s32.totalorder %s48, 1
      %p135 = por %p133, %p134
      %p136 = scmp.ne.s32.totalorder %s128, %s131
      %p137 = scmp.eq.s32.totalorder %s48, 0
      %p138 = por %p136, %p137
      %p139 = scmp.ne.s32.totalorder %s128, %s131
      %p140 = scmp.eq.s32.totalorder %s53, 1
      %p141 = por %p139, %p140
      %p142 = scmp.ne.s32.totalorder %s131, %s132
      %p143 = scmp.eq.s32.totalorder %s53, 0
      %p144 = por %p142, %p143
      %p145 = scmp.ne.s32.totalorder %s131, %s132
      %p146 = scmp.eq.s32.totalorder %s54, 1
      %p147 = por %p145, %p146
      %p149 = scmp.ne.s32.totalorder %s132, %s148
      %p150 = scmp.eq.s32.totalorder %s54, 0
      %p151 = por %p149, %p150
      %s152 = sshra.s32 %s56, 7
      %s153 = sand.u32 %s56, 127
      %s154 = sadd.s32 %s152, %s55
      %s155 = smul.u32 %s154, 128
      %s156 = sshra.s32 %s56, 7
      %s157 = sand.u32 %s56, 127
      %s158 = sadd.s32 %s155, %s157
      %s159 = sld [smem:[#allocation3 + %s158]]
      %s160 = sshra.s32 %s63, 7
      %s161 = sand.u32 %s63, 127
      %s162 = sadd.s32 %s160, %s67
      %s163 = smul.u32 %s162, 128
      %s164 = sshra.s32 %s63, 7
      %s165 = sand.u32 %s63, 127
      %s166 = sadd.s32 %s163, %s165
      %s167 = sld [smem:[#allocation3 + %s166]]
      %s168 = ssub.s32 %s159, %s167
      %p169 = scmp.eq.s32.totalorder %s168, 0
      %s171 = sadd.s32 %s170, 1
      %s172 = scalar_select %p169, %s170, %s171
      %p175 = pneg %p169
      %p176 = scmp.eq.s32.totalorder %s48, 1
      %p177 = por %p175, %p176
      %p178 = scmp.ne.s32.totalorder %s170, %s173
      %p179 = scmp.eq.s32.totalorder %s48, 0
      %p180 = por %p178, %p179
      %p181 = scmp.ne.s32.totalorder %s170, %s173
      %p182 = scmp.eq.s32.totalorder %s53, 1
      %p183 = por %p181, %p182
      %p184 = scmp.ne.s32.totalorder %s173, %s174
      %p185 = scmp.eq.s32.totalorder %s53, 0
      %p186 = por %p184, %p185
      %p187 = scmp.ne.s32.totalorder %s173, %s174
      %p188 = scmp.eq.s32.totalorder %s54, 1
      %p189 = por %p187, %p188
      %p191 = scmp.ne.s32.totalorder %s174, %s190
      %p192 = scmp.eq.s32.totalorder %s54, 0
      %p193 = por %p191, %p192
      %s194 = sshra.s32 %s56, 7
      %s195 = sand.u32 %s56, 127
      %s196 = sadd.s32 %s194, %s55
      %s197 = smul.u32 %s196, 128
      %s198 = sshra.s32 %s56, 7
      %s199 = sand.u32 %s56, 127
      %s200 = sadd.s32 %s197, %s199
      %s201 = sld [smem:[#allocation4 + %s200]]
      %s202 = sshra.s32 %s63, 7
      %s203 = sand.u32 %s63, 127
      %s204 = sadd.s32 %s202, %s67
      %s205 = smul.u32 %s204, 128
      %s206 = sshra.s32 %s63, 7
      %s207 = sand.u32 %s63, 127
      %s208 = sadd.s32 %s205, %s207
      %s209 = sld [smem:[#allocation4 + %s208]]
      %s210 = ssub.s32 %s201, %s209
      %p211 = scmp.eq.s32.totalorder %s210, 0
      %s213 = sadd.s32 %s212, 1
      %s214 = scalar_select %p211, %s212, %s213
      %p217 = pneg %p211
      %p218 = scmp.eq.s32.totalorder %s48, 1
      %p219 = por %p217, %p218
      %p220 = scmp.ne.s32.totalorder %s212, %s215
      %p221 = scmp.eq.s32.totalorder %s48, 0
      %p222 = por %p220, %p221
      %p223 = scmp.ne.s32.totalorder %s212, %s215
      %p224 = scmp.eq.s32.totalorder %s53, 1
      %p225 = por %p223, %p224
      %p226 = scmp.ne.s32.totalorder %s215, %s216
      %p227 = scmp.eq.s32.totalorder %s53, 0
      %p228 = por %p226, %p227
      %p229 = scmp.ne.s32.totalorder %s215, %s216
      %p230 = scmp.eq.s32.totalorder %s54, 1
      %p231 = por %p229, %p230
      %p233 = scmp.ne.s32.totalorder %s216, %s232
      %p234 = scmp.eq.s32.totalorder %s54, 0
      %p235 = por %p233, %p234
      %s236 = ssub.s32 %s55, %s67
      %p237 = scmp.eq.s32.totalorder %s236, 0
      %s239 = sadd.s32 %s238, 1
      %s240 = scalar_select %p237, %s238, %s239
      %p243 = pneg %p237
      %p244 = scmp.eq.s32.totalorder %s48, 1
      %p245 = por %p243, %p244
      %p246 = scmp.ne.s32.totalorder %s238, %s241
      %p247 = scmp.eq.s32.totalorder %s48, 0
      %p248 = por %p246, %p247
      %p249 = scmp.ne.s32.totalorder %s238, %s241
      %p250 = scmp.eq.s32.totalorder %s53, 1
      %p251 = por %p249, %p250
      %p252 = scmp.ne.s32.totalorder %s241, %s242
      %p253 = scmp.eq.s32.totalorder %s53, 0
      %p254 = por %p252, %p253
      %p255 = scmp.ne.s32.totalorder %s241, %s242
      %p256 = scmp.eq.s32.totalorder %s54, 1
      %p257 = por %p255, %p256
      %p259 = scmp.ne.s32.totalorder %s242, %s258
      %p260 = scmp.eq.s32.totalorder %s54, 0
      %p261 = por %p259, %p260
      %s262 = ssub.s32 %s55, %s67
      %p263 = scmp.eq.s32.totalorder %s262, 0
      %s265 = sadd.s32 %s264, 1
      %s266 = scalar_select %p263, %s264, %s265
      %p269 = pneg %p263
      %p270 = scmp.eq.s32.totalorder %s48, 1
      %p271 = por %p269, %p270
      %p272 = scmp.ne.s32.totalorder %s264, %s267
      %p273 = scmp.eq.s32.totalorder %s48, 0
      %p274 = por %p272, %p273
      %p275 = scmp.ne.s32.totalorder %s264, %s267
      %p276 = scmp.eq.s32.totalorder %s53, 1
      %p277 = por %p275, %p276
      %p278 = scmp.ne.s32.totalorder %s267, %s268
      %p279 = scmp.eq.s32.totalorder %s53, 0
      %p280 = por %p278, %p279
      %p281 = scmp.ne.s32.totalorder %s267, %s268
      %p282 = scmp.eq.s32.totalorder %s54, 1
      %p283 = por %p281, %p282
      %p285 = scmp.ne.s32.totalorder %s268, %s284
      %p286 = scmp.eq.s32.totalorder %s54, 0
      %p287 = por %p285, %p286
      %p288 = scmp.le.s32.totalorder 1, %s48
      %p289 = scmp.lt.s32.totalorder %s48, 3
      %p290 = pnand %p288, %p289
      %p291 = pneg %p290
      // Predicated region
      $region9: #{tpu_custom_call.1} parent=5 // pred_check
        _
      $region10: #{tpu_custom_call.1} parent=5 // pred_check_branch
        %293 = sbr.rel (%p290) target = $region12
      $region11: #{tpu_custom_call.1} parent=5 // pred_region
        %s294 = ssub.s32 %s48, 1
      $region12: #{tpu_custom_call.1} parent=5 // pred_fallthru
        _
      %p295 = scmp.lt.s32.totalorder %s48, 2
      // Predicated region
      $region13: #{tpu_custom_call.1} parent=5 // pred_check
        %p296 = pneg %p295
      $region14: #{tpu_custom_call.1} parent=5 // pred_check_branch
        %298 = sbr.rel (%p296) target = $region16
      $region15: #{tpu_custom_call.1} parent=5 // pred_region
        // Predicated region
        $region17: #{tpu_custom_call.1} parent=15 // pred_check
          %p299 = pneg %p96
        $region18: #{tpu_custom_call.1} parent=15 // pred_check_branch
          %301 = sbr.rel (%p299) target = $region20
        $region19: #{tpu_custom_call.1} parent=15 // pred_region
          %s302 = sand.u32 %s86, 1
          %s303 = scalar_lea.sflag [#allocation7], %s302
          %s304 = sand.u32 %s86, 1
          %s305 = smul.addr %s304, 8
          %s306 = scalar_lea.vmem [#allocation6], %s305
          %s307 = sshra.s32 %s56, 7
          %s308 = sand.u32 %s56, 127
          %s309 = sadd.s32 %s307, %s55
          %s310 = smul.u32 %s309, 128
          %s311 = sshra.s32 %s56, 7
          %s312 = sand.u32 %s56, 127
          %s313 = sadd.s32 %s310, %s312
          %s314 = sld [smem:[#allocation3 + %s313]]
          %316 = vsyncadd %s303, 0
          %s317 = smul.addr %s314, 8
          %s318 = scalar_lea.hbm %s3, %s317
          %s320 = sshll.u32 %s318, 4
          %s321 = int_to_ptr.hbm [resolvable:$true] %s320
          %s322 = sshll.u32 %s306, 4
          %s323 = int_to_ptr.vmem [resolvable:$true] %s322
          %325 = dma.hbm_to_vmem [thread:$0]  %s321, 128, %s323, %s303
        $region20: #{tpu_custom_call.1} parent=15 // pred_fallthru
          _
        // Predicated region
        $region21: #{tpu_custom_call.1} parent=15 // pred_check
          %p326 = pneg %p138
        $region22: #{tpu_custom_call.1} parent=15 // pred_check_branch
          %328 = sbr.rel (%p326) target = $region24
        $region23: #{tpu_custom_call.1} parent=15 // pred_region
          %s329 = sand.u32 %s48, 1
          %s330 = scalar_lea.sflag [#allocation10], %s329
          %s331 = sand.u32 %s128, 1
          %s332 = smul.addr %s331, 8
          %s333 = scalar_lea.vmem [#allocation9], %s332
          %s334 = sshra.s32 %s56, 7
          %s335 = sand.u32 %s56, 127
          %s336 = sadd.s32 %s334, %s55
          %s337 = smul.u32 %s336, 128
          %s338 = sshra.s32 %s56, 7
          %s339 = sand.u32 %s56, 127
          %s340 = sadd.s32 %s337, %s339
          %s341 = sld [smem:[#allocation4 + %s340]]
          %343 = vsyncadd %s330, 0
          %s344 = smul.addr %s341, 8
          %s345 = scalar_lea.hbm %s4, %s344
          %s347 = sshll.u32 %s345, 4
          %s348 = int_to_ptr.hbm [resolvable:$true] %s347
          %s349 = sshll.u32 %s333, 4
          %s350 = int_to_ptr.vmem [resolvable:$true] %s349
          %352 = dma.hbm_to_vmem [thread:$0]  %s348, 128, %s350, %s330
        $region24: #{tpu_custom_call.1} parent=15 // pred_fallthru
          _
        // Predicated region
        $region25: #{tpu_custom_call.1} parent=15 // pred_check
          %p353 = pneg %p180
        $region26: #{tpu_custom_call.1} parent=15 // pred_check_branch
          %355 = sbr.rel (%p353) target = $region28
        $region27: #{tpu_custom_call.1} parent=15 // pred_region
          %s356 = sand.u32 %s48, 1
          %s357 = scalar_lea.sflag [#allocation10], %s356
          %s358 = sand.u32 %s170, 1
          %s359 = smul.addr %s358, 8
          %s360 = scalar_lea.vmem [#allocation11], %s359
          %s361 = sshra.s32 %s56, 7
          %s362 = sand.u32 %s56, 127
          %s363 = sadd.s32 %s361, %s55
          %s364 = smul.u32 %s363, 128
          %s365 = sshra.s32 %s56, 7
          %s366 = sand.u32 %s56, 127
          %s367 = sadd.s32 %s364, %s366
          %s368 = sld [smem:[#allocation3 + %s367]]
          %370 = vsyncadd %s357, 0
          %s371 = smul.addr %s368, 8
          %s372 = scalar_lea.hbm %s5, %s371
          %s374 = sshll.u32 %s372, 4
          %s375 = int_to_ptr.hbm [resolvable:$true] %s374
          %s376 = sshll.u32 %s360, 4
          %s377 = int_to_ptr.vmem [resolvable:$true] %s376
          %379 = dma.hbm_to_vmem [thread:$0]  %s375, 128, %s377, %s357
        $region28: #{tpu_custom_call.1} parent=15 // pred_fallthru
          _
        // Predicated region
        $region29: #{tpu_custom_call.1} parent=15 // pred_check
          %p380 = pneg %p222
        $region30: #{tpu_custom_call.1} parent=15 // pred_check_branch
          %382 = sbr.rel (%p380) target = $region32
        $region31: #{tpu_custom_call.1} parent=15 // pred_region
          %s383 = sand.u32 %s212, 1
          %s384 = scalar_lea.sflag [#allocation13], %s383
          %s385 = sand.u32 %s212, 1
          %s386 = smul.addr %s385, 8
          %s387 = scalar_lea.vmem [#allocation12], %s386
          %s388 = sshra.s32 %s56, 7
          %s389 = sand.u32 %s56, 127
          %s390 = sadd.s32 %s388, %s55
          %s391 = smul.u32 %s390, 128
          %s392 = sshra.s32 %s56, 7
          %s393 = sand.u32 %s56, 127
          %s394 = sadd.s32 %s391, %s393
          %s395 = sld [smem:[#allocation4 + %s394]]
          %397 = vsyncadd %s384, 0
          %s398 = smul.addr %s395, 8
          %s399 = scalar_lea.hbm %s6, %s398
          %s401 = sshll.u32 %s399, 4
          %s402 = int_to_ptr.hbm [resolvable:$true] %s401
          %s403 = sshll.u32 %s387, 4
          %s404 = int_to_ptr.vmem [resolvable:$true] %s403
          %406 = dma.hbm_to_vmem [thread:$0]  %s402, 128, %s404, %s384
        $region32: #{tpu_custom_call.1} parent=15 // pred_fallthru
          _
      $region16: #{tpu_custom_call.1} parent=5 // pred_fallthru
        _
      %p407 = scmp.le.s32.totalorder 1, %s48
      %p408 = scmp.lt.s32.totalorder %s48, 3
      %p409 = pnand %p407, %p408
      %p410 = pneg %p409
      // Predicated region
      $region33: #{tpu_custom_call.1} parent=5 // pred_check
        _
      $region34: #{tpu_custom_call.1} parent=5 // pred_check_branch
        %412 = sbr.rel (%p409) target = $region36
      $region35: #{tpu_custom_call.1} parent=5 // pred_region
        %s413 = ssub.s32 %s48, 1
        %s414 = sand.u32 %s89, 1
        %s415 = scalar_lea.sflag [#allocation7], %s414
        %s416 = sand.u32 %s89, 1
        %s417 = smul.addr %s416, 8
        %s418 = scalar_lea.vmem [#allocation6], %s417
        // Predicated region
        $region37: #{tpu_custom_call.1} parent=35 // pred_check
          %p419 = pneg %p102
        $region38: #{tpu_custom_call.1} parent=35 // pred_check_branch
          %421 = sbr.rel (%p419) target = $region40
        $region39: #{tpu_custom_call.1} parent=35 // pred_region
          %423 = dma.done %s415, 128
        $region40: #{tpu_custom_call.1} parent=35 // pred_fallthru
          _
        %s424 = sand.u32 %s53, 1
        %s425 = scalar_lea.sflag [#allocation10], %s424
        %s426 = sand.u32 %s131, 1
        %s427 = smul.addr %s426, 8
        %s428 = scalar_lea.vmem [#allocation9], %s427
        // Predicated region
        $region41: #{tpu_custom_call.1} parent=35 // pred_check
          %p429 = pneg %p144
        $region42: #{tpu_custom_call.1} parent=35 // pred_check_branch
          %431 = sbr.rel (%p429) target = $region44
        $region43: #{tpu_custom_call.1} parent=35 // pred_region
          %433 = dma.done %s425, 128
        $region44: #{tpu_custom_call.1} parent=35 // pred_fallthru
          _
        %s434 = sand.u32 %s53, 1
        %s435 = scalar_lea.sflag [#allocation10], %s434
        %s436 = sand.u32 %s173, 1
        %s437 = smul.addr %s436, 8
        %s438 = scalar_lea.vmem [#allocation11], %s437
        // Predicated region
        $region45: #{tpu_custom_call.1} parent=35 // pred_check
          %p439 = pneg %p186
        $region46: #{tpu_custom_call.1} parent=35 // pred_check_branch
          %441 = sbr.rel (%p439) target = $region48
        $region47: #{tpu_custom_call.1} parent=35 // pred_region
          %443 = dma.done %s435, 128
        $region48: #{tpu_custom_call.1} parent=35 // pred_fallthru
          _
        %s444 = sand.u32 %s215, 1
        %s445 = scalar_lea.sflag [#allocation13], %s444
        %s446 = sand.u32 %s215, 1
        %s447 = smul.addr %s446, 8
        %s448 = scalar_lea.vmem [#allocation12], %s447
        // Predicated region
        $region49: #{tpu_custom_call.1} parent=35 // pred_check
          %p449 = pneg %p228
        $region50: #{tpu_custom_call.1} parent=35 // pred_check_branch
          %451 = sbr.rel (%p449) target = $region52
        $region51: #{tpu_custom_call.1} parent=35 // pred_region
          %453 = dma.done %s445, 128
        $region52: #{tpu_custom_call.1} parent=35 // pred_fallthru
          _
        %s454 = sand.u32 %s89, 1
        %s455 = scalar_lea.sflag [#allocation7], %s454
        %s456 = sand.u32 %s89, 1
        %s457 = smul.addr %s456, 8
        %s458 = scalar_lea.vmem [#allocation6], %s457
        %p459 = pneg %p102
        %p460 = pneg %p99
        %s461 = sand.u32 %s53, 1
        %s462 = scalar_lea.sflag [#allocation10], %s461
        %s463 = sand.u32 %s131, 1
        %s464 = smul.addr %s463, 8
        %s465 = scalar_lea.vmem [#allocation9], %s464
        %p466 = pneg %p144
        %p467 = pneg %p141
        %s468 = sand.u32 %s53, 1
        %s469 = scalar_lea.sflag [#allocation10], %s468
        %s470 = sand.u32 %s173, 1
        %s471 = smul.addr %s470, 8
        %s472 = scalar_lea.vmem [#allocation11], %s471
        %p473 = pneg %p186
        %p474 = pneg %p183
        %s475 = sand.u32 %s215, 1
        %s476 = scalar_lea.sflag [#allocation13], %s475
        %s477 = sand.u32 %s215, 1
        %s478 = smul.addr %s477, 8
        %s479 = scalar_lea.vmem [#allocation12], %s478
        %p480 = pneg %p228
        %p481 = pneg %p225
        %p482 = pneg %p254
        %p483 = pneg %p251
        %s484 = sand.u32 %s241, 1
        %s485 = scalar_lea.sflag [#allocation8], %s484
        %s486 = sand.u32 %s241, 1
        %s487 = smul.addr %s486, 8
        %s488 = scalar_lea.vmem [#allocation14], %s487
        %p489 = pneg %p280
        %p490 = pneg %p277
        %s491 = sand.u32 %s267, 1
        %s492 = scalar_lea.sflag [#allocation16], %s491
        %s493 = sand.u32 %s267, 1
        %s494 = smul.addr %s493, 8
        %s495 = scalar_lea.vmem [#allocation15], %s494
        %s496 = sshra.s32 %s58, 7
        %s497 = sand.u32 %s58, 127
        %s498 = sadd.s32 %s496, %s57
        %s499 = smul.u32 %s498, 128
        %s500 = sshra.s32 %s58, 7
        %s501 = sand.u32 %s58, 127
        %s502 = sadd.s32 %s499, %s501
        %s503 = sld [smem:[#allocation3 + %s502]]
        %s504 = sshra.s32 %s58, 7
        %s505 = sand.u32 %s58, 127
        %s506 = sadd.s32 %s504, %s57
        %s507 = smul.u32 %s506, 128
        %s508 = sshra.s32 %s58, 7
        %s509 = sand.u32 %s58, 127
        %s510 = sadd.s32 %s507, %s509
        %s511 = sld [smem:[#allocation4 + %s510]]
        %s512 = sshra.s32 %s58, 7
        %s513 = sand.u32 %s58, 127
        %s514 = sadd.s32 %s512, %s57
        %s515 = smul.u32 %s514, 128
        %s516 = sshra.s32 %s58, 7
        %s517 = sand.u32 %s58, 127
        %s518 = sadd.s32 %s515, %s517
        %s519 = sld [smem:[#allocation3 + %s518]]
        %s520 = sshra.s32 %s58, 7
        %s521 = sand.u32 %s58, 127
        %s522 = sadd.s32 %s520, %s57
        %s523 = smul.u32 %s522, 128
        %s524 = sshra.s32 %s58, 7
        %s525 = sand.u32 %s58, 127
        %s526 = sadd.s32 %s523, %s525
        %s527 = sld [smem:[#allocation4 + %s526]]
        %p528 = scmp.eq.s32.totalorder %s58, 0
        // Predicated region
        $region53: #{tpu_custom_call.1} parent=35 // pred_check
          %p529 = pneg %p528
        $region54: #{tpu_custom_call.1} parent=35 // pred_check_branch
          %531 = sbr.rel (%p529) target = $region56
        $region55: #{tpu_custom_call.1} parent=35 // pred_region
          %vm532 = vcmask 64512
          %533 = vst.msk [vmem:[%s488] sm:$0xff] %vm532, 0.0
          %534 = vst.msk [vmem:[%s495] sm:$0xff] %vm532, 0.0
        $region56: #{tpu_custom_call.1} parent=35 // pred_fallthru
          _
        %s535 = sshra.s32 %s58, 7
        %s536 = sand.u32 %s58, 127
        %s537 = sadd.s32 %s535, %s57
        %s538 = smul.u32 %s537, 128
        %s539 = sshra.s32 %s58, 7
        %s540 = sand.u32 %s58, 127
        %s541 = sadd.s32 %s538, %s540
        %s542 = sld [smem:[#allocation5 + %s541]]
        %s543 = scvt.s32.f32 %s542
        %v544 = vld [vmem:[%s488] sm:$0xff]
        %v545 = vld [vmem:[%s418] sm:$0xff]
        %v546 = vld [vmem:[%s428] sm:$0xff]
        %vm547 = vcmask 261120
        %v549 = vsel %vm547, %v545, 0
        %v552 = vsel %vm547, %v546, 0
        %554 = vmatpush.xpose.msra.mxu0 0.0
        %555 = vmatpush.xpose.msra.mxu0 0.0
        %556 = vmatpush.xpose.msra.mxu0 0.0
        %557 = vmatpush.xpose.msra.mxu0 0.0
        %558 = vmatpush.xpose.msra.mxu0 0.0
        %559 = vmatpush.xpose.msra.mxu0 0.0
        %560 = vmatpush.xpose.msra.mxu0 0.0
        %561 = vmatpush.xpose.msra.mxu0 0.0
        %562 = vmatpush.xpose.msra.mxu0 0.0
        %563 = vmatpush.xpose.msra.mxu0 0.0
        %564 = vmatpush.xpose.msra.mxu0 0.0
        %565 = vmatpush.xpose.msra.mxu0 0.0
        %566 = vmatpush.xpose.msra.mxu0 0.0
        %567 = vmatpush.xpose.msra.mxu0 0.0
        %568 = vmatpush.xpose.msra.mxu0 0.0
        %569 = vmatpush.xpose.msra.mxu0 %v552
        %570 = vmatmul.f32.gmra.mxu0 %v549
        %v571 = vpop.f32.mrf.mxu0
        %v572 = vadd.f32 0.0, %v571
        %573 = vdwg.mxu0
        %v574 = vmul.f32 %v572, 1.442695
        %v575 = vpow.pop %v574
        %v576 = vadd.f32 %v575, 0.0
        %v577 = vstv %s543
        %v578 = vmul.f32 %v577, %v576
        %v579 = vadd.f32 %v544, %v578
        %vm580 = vcmask 64512
        %581 = vst.msk [vmem:[%s488] sm:$0xff] %vm580, %v579
        %v582 = vld [vmem:[%s495] sm:$0xff]
        %v583 = vld [vmem:[%s438] sm:$0xff]
        %v584 = vld [vmem:[%s448] sm:$0xff]
        %v586 = vsel %vm547, %v583, 0
        %v589 = vsel %vm547, %v584, 0
        %591 = vmatpush.xpose.msra.mxu0 0.0
        %592 = vmatpush.xpose.msra.mxu0 0.0
        %593 = vmatpush.xpose.msra.mxu0 0.0
        %594 = vmatpush.xpose.msra.mxu0 0.0
        %595 = vmatpush.xpose.msra.mxu0 0.0
        %596 = vmatpush.xpose.msra.mxu0 0.0
        %597 = vmatpush.xpose.msra.mxu0 0.0
        %598 = vmatpush.xpose.msra.mxu0 0.0
        %599 = vmatpush.xpose.msra.mxu0 0.0
        %600 = vmatpush.xpose.msra.mxu0 0.0
        %601 = vmatpush.xpose.msra.mxu0 0.0
        %602 = vmatpush.xpose.msra.mxu0 0.0
        %603 = vmatpush.xpose.msra.mxu0 0.0
        %604 = vmatpush.xpose.msra.mxu0 0.0
        %605 = vmatpush.xpose.msra.mxu0 0.0
        %606 = vmatpush.xpose.msra.mxu0 %v589
        %607 = vmatmul.f32.gmra.mxu0 %v586
        %v608 = vpop.f32.mrf.mxu0
        %v609 = vadd.f32 0.0, %v608
        %610 = vdwg.mxu0
        %v611 = vmul.f32 %v609, 1.442695
        %v612 = vpow.pop %v611
        %v613 = vadd.f32 %v612, 0.0
        %v614 = vmul.f32 %v577, %v613
        %v615 = vadd.f32 %v582, %v614
        %616 = vst.msk [vmem:[%s495] sm:$0xff] %vm580, %v615
        %s617 = sand.u32 %s241, 1
        %s618 = scalar_lea.sflag [#allocation8], %s617
        %s619 = sand.u32 %s241, 1
        %s620 = smul.addr %s619, 8
        %s621 = scalar_lea.vmem [#allocation14], %s620
        %s622 = sand.u32 %s267, 1
        %s623 = scalar_lea.sflag [#allocation16], %s622
        %s624 = sand.u32 %s267, 1
        %s625 = smul.addr %s624, 8
        %s626 = scalar_lea.vmem [#allocation15], %s625
        // Predicated region
        $region57: #{tpu_custom_call.1} parent=35 // pred_check
          %p627 = pneg %p251
        $region58: #{tpu_custom_call.1} parent=35 // pred_check_branch
          %629 = sbr.rel (%p627) target = $region60
        $region59: #{tpu_custom_call.1} parent=35 // pred_region
          %631 = vsyncadd %s618, 0
          %s632 = smul.addr %s57, 8
          %s633 = scalar_lea.hbm %s7, %s632
          %s635 = sshll.u32 %s621, 4
          %s636 = int_to_ptr.vmem [resolvable:$true] %s635
          %s637 = sshll.u32 %s633, 4
          %s638 = int_to_ptr.hbm [resolvable:$true] %s637
          %640 = dma.vmem_to_hbm [thread:$0]  %s636, 128, %s638, %s618
        $region60: #{tpu_custom_call.1} parent=35 // pred_fallthru
          _
        // Predicated region
        $region61: #{tpu_custom_call.1} parent=35 // pred_check
          %p641 = pneg %p277
        $region62: #{tpu_custom_call.1} parent=35 // pred_check_branch
          %643 = sbr.rel (%p641) target = $region64
        $region63: #{tpu_custom_call.1} parent=35 // pred_region
          %645 = vsyncadd %s623, 0
          %s646 = smul.addr %s57, 8
          %s647 = scalar_lea.hbm %s8, %s646
          %s649 = sshll.u32 %s626, 4
          %s650 = int_to_ptr.vmem [resolvable:$true] %s649
          %s651 = sshll.u32 %s647, 4
          %s652 = int_to_ptr.hbm [resolvable:$true] %s651
          %654 = dma.vmem_to_hbm [thread:$0]  %s650, 128, %s652, %s623
        $region64: #{tpu_custom_call.1} parent=35 // pred_fallthru
          _
      $region36: #{tpu_custom_call.1} parent=5 // pred_fallthru
        _
      %p655 = scmp.le.s32.totalorder 2, %s48
      // Predicated region
      $region65: #{tpu_custom_call.1} parent=5 // pred_check
        %p656 = pneg %p655
      $region66: #{tpu_custom_call.1} parent=5 // pred_check_branch
        %658 = sbr.rel (%p656) target = $region68
      $region67: #{tpu_custom_call.1} parent=5 // pred_region
        %s659 = ssub.s32 %s48, 2
        // Predicated region
        $region69: #{tpu_custom_call.1} parent=67 // pred_check
          %p660 = pneg %p257
        $region70: #{tpu_custom_call.1} parent=67 // pred_check_branch
          %662 = sbr.rel (%p660) target = $region72
        $region71: #{tpu_custom_call.1} parent=67 // pred_region
          %s663 = sand.u32 %s242, 1
          %s664 = scalar_lea.sflag [#allocation8], %s663
          %s665 = sand.u32 %s242, 1
          %s666 = smul.addr %s665, 8
          %s667 = scalar_lea.vmem [#allocation14], %s666
          %669 = dma.done %s664, 128
        $region72: #{tpu_custom_call.1} parent=67 // pred_fallthru
          _
        // Predicated region
        $region73: #{tpu_custom_call.1} parent=67 // pred_check
          %p670 = pneg %p283
        $region74: #{tpu_custom_call.1} parent=67 // pred_check_branch
          %672 = sbr.rel (%p670) target = $region76
        $region75: #{tpu_custom_call.1} parent=67 // pred_region
          %s673 = sand.u32 %s268, 1
          %s674 = scalar_lea.sflag [#allocation16], %s673
          %s675 = sand.u32 %s268, 1
          %s676 = smul.addr %s675, 8
          %s677 = scalar_lea.vmem [#allocation15], %s676
          %679 = dma.done %s674, 128
        $region76: #{tpu_custom_call.1} parent=67 // pred_fallthru
          _
      $region68: #{tpu_custom_call.1} parent=5 // pred_fallthru
        _
    $region6: #{tpu_custom_call.1} parent=1 // loop_footer
      %s52 = sadd.s32 1, %s48
    $region7: #{tpu_custom_call.1} parent=1 // loop_footer_branch
      %47 = sbr.rel target = $region3
    $region8: #{tpu_custom_call.1} parent=1 // loop_exit
      _
    %680 = vsyncpa [#allocation7], 1
    %s681 = scalar_lea.sflag [#allocation7], 1
    %682 = vsyncpa %s681, 1
    %683 = vsyncpa [#allocation10], 1
    %s684 = scalar_lea.sflag [#allocation10], 1
    %685 = vsyncpa %s684, 1
    %686 = vsyncpa [#allocation13], 1
    %s687 = scalar_lea.sflag [#allocation13], 1
    %688 = vsyncpa %s687, 1
    %689 = vsyncpa [#allocation8], 1
    %s690 = scalar_lea.sflag [#allocation8], 1
    %691 = vsyncpa %s690, 1
    %692 = vsyncpa [#allocation16], 1
    %s693 = scalar_lea.sflag [#allocation16], 1
    %694 = vsyncpa %s693, 1

</llo_original>
